<compile_context>
chip_gen: v7x
topology: tpu7x:2x2x1
jax: 0.10.0
libtpu: 0.0.40
codegen_flags: <defaults>
</compile_context>

<pallas_src>
import jax
import jax.numpy as jnp
from jax.experimental import pallas as pl
from jax.experimental.pallas import tpu as pltpu


def _pos_rows_copy_kernel(enc_ref, out_ref):
    # enc_ref / out_ref: (TS, d_model) lane/sublane-dense tiles.
    out_ref[...] = enc_ref[...]


def make_positional_encoding(max_len, d_model, dtype=jnp.float32):
    """Mirrors PositionalEmbedding.__init__ (interleaved sin/cos table)."""
    pos = jnp.arange(max_len, dtype=jnp.float32)[:, None]           # (max_len, 1)
    _2i = jnp.arange(0, d_model, 2, dtype=jnp.float32)              # (d_model/2,)
    angle = pos / jnp.power(10000.0, _2i / d_model)                 # (max_len, d_model/2)
    enc = jnp.zeros((max_len, d_model), dtype=jnp.float32)
    enc = enc.at[:, 0::2].set(jnp.sin(angle))
    enc = enc.at[:, 1::2].set(jnp.cos(angle))
    return enc.astype(dtype)


def positional_embedding(x, encoding, *, max_tile_rows=1024, tile_bytes_budget=2 << 20):
    """forward(x): returns encoding[:seq_len, :] where seq_len = x.shape[1]."""
    _, seq_len = x.shape
    max_len, d_model = encoding.shape
    if seq_len > max_len:
        raise ValueError(f"seq_len={seq_len} exceeds max_len={max_len}")

    itemsize = jnp.dtype(encoding.dtype).itemsize

    # Sublane-dense row count (multiple of 8); the lane dim is always the full
    # d_model, so the (8, 128) block constraint is satisfied for any d_model.
    s_pad = 8 * pl.cdiv(seq_len, 8)

    # If padding pushes us past the table, zero-pad the table so the kernel never
    # reads out-of-bounds rows (rare: max_len not a multiple of 8, seq_len ~ max_len).
    enc_in = encoding
    if s_pad > max_len:
        enc_in = jnp.pad(encoding, ((0, s_pad - max_len), (0, 0)))

    # Tile rows: as many as a per-buffer VMEM byte budget allows (double-buffered
    # input + output blocks => 4 * tile_bytes resident), capped at max_tile_rows,
    # rounded to a multiple of 8, and never exceeding the padded row count so small
    # sequences run as a single grid step.
    rows_budget = max(8, tile_bytes_budget // max(1, d_model * itemsize))
    ts = min(s_pad, max_tile_rows, rows_budget)
    ts = max(8, ts - (ts % 8))
    grid = (pl.cdiv(s_pad, ts),)

    out = pl.pallas_call(
        _pos_rows_copy_kernel,
        out_shape=jax.ShapeDtypeStruct((s_pad, d_model), encoding.dtype),
        grid=grid,
        in_specs=[pl.BlockSpec((ts, d_model), lambda i: (i, 0))],
        out_specs=pl.BlockSpec((ts, d_model), lambda i: (i, 0)),
        compiler_params=pltpu.CompilerParams(
            dimension_semantics=("parallel",)
        ),
    )(enc_in)

    # TODO(synk): optionally cast to bf16 in-kernel if the consumer runs in bf16
    # (halves HBM write traffic); kept float32 to match the PyTorch buffer dtype.
    return out if s_pad == seq_len else out[:seq_len]


if __name__ == "__main__":
    # Small shapes consistent with the module's forward.
    d_model = 128     # multiple of 128 -> lane-dense blocks / unmasked stores
    max_len = 64
    batch, seq = 2, 16

    key = jax.random.PRNGKey(0)

    # "init": precompute the sin/cos table (as the PyTorch __init__ does).
    encoding = make_positional_encoding(max_len, d_model)

    # forward input: token ids — only their shape (batch, seq) matters.
    x = jax.random.randint(key, (batch, seq), 0, 1000, dtype=jnp.int32)

    out = positional_embedding(x, encoding)
    out = jax.block_until_ready(out)
    assert out.shape == (seq, d_model)
    assert jnp.allclose(out, encoding[:seq], atol=1e-7), "mismatch vs reference"

    # Ragged seq_len (not a multiple of 8) exercises the pad-and-slice path.
    x2 = jax.random.randint(key, (batch, 12), 0, 1000, dtype=jnp.int32)
    out2 = jax.block_until_ready(positional_embedding(x2, encoding))
    assert out2.shape == (12, d_model)
    assert jnp.allclose(out2, encoding[:12], atol=1e-7), "mismatch vs reference (ragged)"

    # seq_len == max_len (full-table path, single or multi tile depending on budget).
    x3 = jax.random.randint(key, (batch, max_len), 0, 1000, dtype=jnp.int32)
    out3 = jax.block_until_ready(positional_embedding(x3, encoding))
    assert out3.shape == (max_len, d_model)
    assert jnp.allclose(out3, encoding, atol=1e-7), "mismatch vs reference (full)"

    print("KERNEL_OK")
</pallas_src>

<mosaic_0001>
module attributes {stable_mosaic.version = 11 : i64} {
  func.func @_pos_rows_copy_kernel(%arg0: i32, %arg1: memref<16x128xf32, #tpu.memory_space<vmem>>, %arg2: memref<16x128xf32, #tpu.memory_space<vmem>>) attributes {dimension_semantics = [#tpu.dimension_semantics<parallel>], iteration_bounds = array<i64: 1>, scalar_prefetch = 0 : i64, scratch_operands = 0 : i64, tpu.core_type = #tpu.core_type<tc>, window_params = [{transform_indices = @transform_0, window_bounds = array<i64: 16, 128>}, {transform_indices = @transform_1, window_bounds = array<i64: 16, 128>}]} {
    %c0 = arith.constant 0 : index
    %c0_0 = arith.constant 0 : index
    %0 = vector.load %arg1[%c0, %c0_0] : memref<16x128xf32, #tpu.memory_space<vmem>>, vector<16x128xf32>
    %c0_1 = arith.constant 0 : index
    %c0_2 = arith.constant 0 : index
    %1 = vector.load %arg2[%c0_1, %c0_2] : memref<16x128xf32, #tpu.memory_space<vmem>>, vector<16x128xf32>
    tpu.vector_store %arg2[%c0_1, %c0_2], %0 {strides = array<i32>} : memref<16x128xf32, #tpu.memory_space<vmem>>, vector<16x128xf32>,
    return
  }
  func.func @transform_0(%arg0: i32) -> (i32, i32) {
    %c0_i32 = arith.constant 0 : i32
    %c0_i32_0 = arith.constant 0 : i32
    return %arg0, %c0_i32 : i32, i32
  }
  func.func @transform_1(%arg0: i32) -> (i32, i32) {
    %c0_i32 = arith.constant 0 : i32
    %c0_i32_0 = arith.constant 0 : i32
    return %arg0, %c0_i32 : i32, i32
  }
}

</mosaic_0001>

<llo_original>
// kernel: tpu_custom_call.1
$region0: #{tpu_custom_call.1}
  #allocation0 [shape = 'u32[]', space=smem, size = 0x4, offset = 0x4, fixed_abs, tag = 'smem constant byte address 0x4 - core index']
  #allocation1 [shape = 'u32[144,128]{1,0:T(1,128)}', space=vmem, size = 0x12000, scoped, tag = 'internal scratch']
  %s0 = inlined_call_operand.hbm [shape: f32[64,128], index: 0, kind: input, shape index: {}]
  %s1 = inlined_call_operand.hbm [shape: f32[16,128], index: 1, kind: output, shape index: {}]
  %s2 = sld [smem:[#allocation0]]
  $region18: #{tpu_custom_call.1} parent=0
    _
  %s4 = ssub.s32 1, %s2
  %s5 = scalar_select 0, %s4, %s2
  $region1: #{tpu_custom_call.1} parent=0
    #allocation2 [shape = 'u8[8192]{0}', space=vmem, size = 0x2000, scoped, tag = 'input window, operand 0, single buffered']
    #allocation3 [shape = 's32[1]{0}', space=sflag, size = 0x4, scoped, tag = 'scoped memory for tpu_custom_call.1']
    #allocation4 [shape = 's32[1]{0}', space=sflag, size = 0x4, scoped, tag = 'scoped memory for tpu_custom_call.1']
    #allocation5 [shape = 'u8[8192]{0}', space=vmem, size = 0x2000, scoped, tag = 'output window, operand 0, single buffered']
    %6 = vsyncpa [#allocation3], 0
    %7 = vsyncpa [#allocation4], 0
    // Predicated region
    $region2: #{tpu_custom_call.1} parent=1 // pred_check
      _
    $region3: #{tpu_custom_call.1} parent=1 // pred_check_branch
      %9 = sbr.rel (0) target = $region5
    $region4: #{tpu_custom_call.1} parent=1 // pred_region
      %s11 = ssub.s32 256, 256
      %12 = vsyncadd [#allocation3], %s11
      %s13 = sshll.u32 [#allocation2], 4
      %s14 = int_to_ptr.vmem [resolvable:$true] %s13
      %19 = dma.hbm_to_vmem [thread:$0]  %s0, 256, %s14, [#allocation3], 128, 128, 8
    $region5: #{tpu_custom_call.1} parent=1 // pred_fallthru
      _
    // Predicated region
    $region6: #{tpu_custom_call.1} parent=1 // pred_check
      _
    $region7: #{tpu_custom_call.1} parent=1 // pred_check_branch
      %21 = sbr.rel (0) target = $region9
    $region8: #{tpu_custom_call.1} parent=1 // pred_region
      %22 = dma.done [#allocation3], 256
    $region9: #{tpu_custom_call.1} parent=1 // pred_fallthru
      _
    %v23 = vld [vmem:[#allocation2] sm:$0xff]
    %v24 = vld [vmem:[#allocation2 + $0x8] sm:$0xff]
    %25 = vst [vmem:[#allocation5] sm:$0xff] %v23
    %26 = vst [vmem:[#allocation5 + $0x8] sm:$0xff] %v24
    // Predicated region
    $region10: #{tpu_custom_call.1} parent=1 // pred_check
      _
    $region11: #{tpu_custom_call.1} parent=1 // pred_check_branch
      %28 = sbr.rel (0) target = $region13
    $region12: #{tpu_custom_call.1} parent=1 // pred_region
      %s30 = ssub.s32 256, 256
      %31 = vsyncadd [#allocation4], %s30
      %s32 = sshll.u32 [#allocation5], 4
      %s33 = int_to_ptr.vmem [resolvable:$true] %s32
      %38 = dma.vmem_to_hbm [thread:$0]  %s33, 256, %s1, [#allocation4], 128, 128, 8
    $region13: #{tpu_custom_call.1} parent=1 // pred_fallthru
      _
    // Predicated region
    $region14: #{tpu_custom_call.1} parent=1 // pred_check
      _
    $region15: #{tpu_custom_call.1} parent=1 // pred_check_branch
      %40 = sbr.rel (0) target = $region17
    $region16: #{tpu_custom_call.1} parent=1 // pred_region
      %41 = dma.done [#allocation4], 256
    $region17: #{tpu_custom_call.1} parent=1 // pred_fallthru
      _
    %42 = vsyncpa [#allocation3], 1
    %43 = vsyncpa [#allocation4], 1

</llo_original>
